<compile_context>
chip_gen: v7x
topology: tpu7x:2x2x1
jax: 0.10.0
libtpu: 0.0.40
codegen_flags: <defaults>
</compile_context>

<pallas_src>
import functools

import jax
import jax.numpy as jnp
from jax.experimental import pallas as pl
from jax.experimental.pallas import tpu as pltpu

LANES = 128
_SUBLANE_MULT = 32            # satisfies f32 (8,128), bf16 (16,128), int8 (32,128) tiling
_MAX_SLABS = 2                # one slab per TensorCore on v7x; harmless on v5e/v6e
_MIN_TILES_PER_SLAB = 4       # keep each slab's reduction axis long enough to pipeline
_MIN_PALLAS_ELEMS = 64 * 1024 # below this, kernel-launch latency beats any win
_MAX_TILE_ROWS = 8192         # 1M elements per input per grid step (~2-3 MiB/step)


def _round_up(x, m):
    return (x + m - 1) // m * m


def _round_down(x, m):
    return x // m * m


def _prep(flat):
    # int8/uint8 masks stream straight through (minimum HBM bytes); bool still
    # needs one widening pass -> prefer passing int8 masks at the API.
    # TODO(synk): accept bool refs natively once Mosaic i1-load support is confirmed.
    if flat.dtype == jnp.bool_:
        flat = flat.astype(jnp.int8)
    return flat


def _choose_tiling(n, tile_rows_max):
    """Static tiling -> (tile_rows, num_slabs, tiles_per_slab, n_main).

    tile_rows == 0 means "use the pure-jnp fallback"."""
    total_rows = n // LANES
    if n < _MIN_PALLAS_ELEMS or total_rows < _SUBLANE_MULT:
        return 0, 1, 0, 0
    num_slabs = max(1, min(_MAX_SLABS,
                           total_rows // (_MIN_TILES_PER_SLAB * _SUBLANE_MULT)))
    # Enough tiles that each slab gets >= _MIN_TILES_PER_SLAB reduction steps,
    # but tiles as large as possible (amortize per-step overhead).
    tiles_wanted = max(num_slabs * _MIN_TILES_PER_SLAB,
                       -(-total_rows // tile_rows_max))          # cdiv
    tiles_wanted = _round_up(tiles_wanted, num_slabs)
    tile_rows = min(tile_rows_max,
                    _round_down(total_rows // tiles_wanted, _SUBLANE_MULT))
    if tile_rows < _SUBLANE_MULT:
        return 0, 1, 0, 0
    tiles_per_slab = (total_rows // tile_rows) // num_slabs
    n_main = num_slabs * tiles_per_slab * tile_rows * LANES
    return tile_rows, num_slabs, tiles_per_slab, n_main


def _vmem_limit_bytes(tile_rows, itemsizes, out_rows):
    # double-buffered inputs + output accumulator blocks + modest slack;
    # always well under the 32 MiB scoped default and v7x's 64 MiB physical VMEM.
    need = sum(2 * tile_rows * LANES * it for it in itemsizes)
    need += 2 * out_rows * LANES * 4
    return int(min(max(need + (4 << 20), 8 << 20), 32 << 20))


# ----------------------------- binary path ---------------------------------


def _binary_dsc_kernel(x_ref, y_ref, o_ref, *, rows8, int_mask):
    # o_ref: (24,128) per-slab accumulator, resident across the reduction axis.
    # rows 0-7: intersection partials, 8-15: sum(inputs), 16-23: sum(targets).
    @pl.when(pl.program_id(1) == 0)
    def _():
        o_ref[...] = jnp.zeros_like(o_ref)

    x = x_ref[...].astype(jnp.float32)
    if int_mask:
        m = y_ref[...] != 0                       # {0,1} mask: skip int->f32 widen
        prod = jnp.where(m, x, 0.0)
        yf = m.astype(jnp.float32)
    else:
        yf = y_ref[...].astype(jnp.float32)       # soft/float targets: exact multiply
        prod = x * yf

    def part(v):                                  # (tile_rows,128) -> (8,128) partial
        return jnp.sum(v.reshape(rows8, 8, LANES), axis=0)

    o_ref[0:8, :] += part(prod)
    o_ref[8:16, :] += part(x)
    o_ref[16:24, :] += part(yf)


def _binary_stats_jnp(x, y, int_mask):
    xf = x.astype(jnp.float32)
    if int_mask:
        m = y != 0
        return (jnp.sum(jnp.where(m, xf, 0.0)), jnp.sum(xf),
                jnp.sum(m.astype(jnp.float32)))
    yf = y.astype(jnp.float32)
    return jnp.sum(xf * yf), jnp.sum(xf), jnp.sum(yf)


def dsc_loss_binary(inputs, targets, smooth=1.0, tile_rows=_MAX_TILE_ROWS):
    x = _prep(inputs.reshape(-1))
    y = _prep(targets.reshape(-1))
    int_mask = bool(jnp.issubdtype(y.dtype, jnp.integer))

    n = x.shape[0]
    tile_rows = _round_up(max(int(tile_rows), _SUBLANE_MULT), _SUBLANE_MULT)
    tile_rows, num_slabs, tiles_per_slab, n_main = _choose_tiling(n, tile_rows)

    inter = sum_x = sum_y = jnp.float32(0.0)

    if n_main > 0:
        acc_rows = 24
        xm = x[:n_main].reshape(-1, LANES)
        ym = y[:n_main].reshape(-1, LANES)
        in_map = lambda s, i: (s * tiles_per_slab + i, 0)
        kernel = functools.partial(_binary_dsc_kernel,
                                   rows8=tile_rows // 8, int_mask=int_mask)
        out = pl.pallas_call(
            kernel,
            out_shape=jax.ShapeDtypeStruct((num_slabs * acc_rows, LANES), jnp.float32),
            grid_spec=pltpu.PrefetchScalarGridSpec(
                num_scalar_prefetch=0,
                grid=(num_slabs, tiles_per_slab),
                in_specs=[
                    pl.BlockSpec((tile_rows, LANES), in_map),
                    pl.BlockSpec((tile_rows, LANES), in_map),
                ],
                out_specs=pl.BlockSpec((acc_rows, LANES), lambda s, i: (s, 0)),
            ),
            compiler_params=pltpu.CompilerParams(
                # TODO(synk): confirm with xprof that "parallel" shards the slab
                # axis across v7x's two TensorCores; if not, switch that axis to
                # pltpu.CORE_PARALLEL on multi-core chips.
                dimension_semantics=("parallel", "arbitrary"),
                vmem_limit_bytes=_vmem_limit_bytes(
                    tile_rows, (x.dtype.itemsize, y.dtype.itemsize),
                    num_slabs * acc_rows),
            ),
        )(xm, ym)
        sums = jnp.sum(out.reshape(num_slabs, 3, 8, LANES), axis=(0, 2, 3))
        inter, sum_x, sum_y = sums[0], sums[1], sums[2]

    if n > n_main:  # small (<< one tile for typical inputs) tail: plain jnp, no pad copy
        ti, tx, ty = _binary_stats_jnp(x[n_main:], y[n_main:], int_mask)
        inter, sum_x, sum_y = inter + ti, sum_x + tx, sum_y + ty

    dice = (2.0 * inter + smooth) / (sum_x + sum_y + smooth)
    return 1.0 - dice


# --------------------------- multiclass path --------------------------------


def _multiclass_dsc_kernel(x_ref, y_ref, o_ref, *, num_classes, rows8):
    # o_ref: (24*(num_classes-1), 128) per-slab accumulator.  Class c (c>=1; the
    # loss never reads class-0 stats) owns rows [24*(c-1), 24*c): 8-row (8,128)
    # partials of intersection / pred-count / target-count.
    @pl.when(pl.program_id(1) == 0)
    def _():
        o_ref[...] = jnp.zeros_like(o_ref)

    x = x_ref[...]
    y = y_ref[...]
    eq = x == y  # hoisted: shared by every class's intersection

    def part(v):                                  # (tile_rows,128) -> (8,128) partial
        return jnp.sum(v.reshape(rows8, 8, LANES), axis=0)

    for c in range(1, num_classes):               # static python unroll (num_classes small)
        pc = x == c
        tc = y == c
        r = 24 * (c - 1)
        o_ref[r:r + 8, :] += part((pc & eq).astype(jnp.float32))
        o_ref[r + 8:r + 16, :] += part(pc.astype(jnp.float32))
        o_ref[r + 16:r + 24, :] += part(tc.astype(jnp.float32))


def _multiclass_stats_jnp(x, y, num_classes):
    inter, pred_cnt, true_cnt = [], [], []
    for c in range(1, num_classes):
        pc = x == c
        tc = y == c
        inter.append(jnp.sum((pc & tc).astype(jnp.float32)))
        pred_cnt.append(jnp.sum(pc.astype(jnp.float32)))
        true_cnt.append(jnp.sum(tc.astype(jnp.float32)))
    return jnp.stack(inter), jnp.stack(pred_cnt), jnp.stack(true_cnt)


def dsc_loss_multiclass(inputs, targets, num_classes, smooth=1.0,
                        tile_rows=_MAX_TILE_ROWS):
    if num_classes is None or num_classes < 2:
        raise ValueError("multiclass DSC needs num_classes >= 2")
    x = _prep(inputs.reshape(-1))   # label maps stay in their native (narrow) dtype
    y = _prep(targets.reshape(-1))

    n = x.shape[0]
    tile_rows = _round_up(max(int(tile_rows), _SUBLANE_MULT), _SUBLANE_MULT)
    tile_rows, num_slabs, tiles_per_slab, n_main = _choose_tiling(n, tile_rows)

    nc1 = num_classes - 1
    inter = jnp.zeros((nc1,), jnp.float32)
    pred_cnt = jnp.zeros((nc1,), jnp.float32)
    true_cnt = jnp.zeros((nc1,), jnp.float32)

    if n_main > 0:
        acc_rows = 24 * nc1
        xm = x[:n_main].reshape(-1, LANES)
        ym = y[:n_main].reshape(-1, LANES)
        in_map = lambda s, i: (s * tiles_per_slab + i, 0)
        kernel = functools.partial(_multiclass_dsc_kernel,
                                   num_classes=num_classes, rows8=tile_rows // 8)
        out = pl.pallas_call(
            kernel,
            out_shape=jax.ShapeDtypeStruct((num_slabs * acc_rows, LANES), jnp.float32),
            grid_spec=pltpu.PrefetchScalarGridSpec(
                num_scalar_prefetch=0,
                grid=(num_slabs, tiles_per_slab),
                in_specs=[
                    pl.BlockSpec((tile_rows, LANES), in_map),
                    pl.BlockSpec((tile_rows, LANES), in_map),
                ],
                out_specs=pl.BlockSpec((acc_rows, LANES), lambda s, i: (s, 0)),
            ),
            compiler_params=pltpu.CompilerParams(
                dimension_semantics=("parallel", "arbitrary"),
                vmem_limit_bytes=_vmem_limit_bytes(
                    tile_rows, (x.dtype.itemsize, y.dtype.itemsize),
                    num_slabs * acc_rows),
            ),
        )(xm, ym)
        stats = jnp.sum(out.reshape(num_slabs, nc1, 3, 8, LANES), axis=(0, 3, 4))
        inter = inter + stats[:, 0]
        pred_cnt = pred_cnt + stats[:, 1]
        true_cnt = true_cnt + stats[:, 2]

    if n > n_main:  # small tail: plain jnp, no pad copy
        ti, tp, tt = _multiclass_stats_jnp(x[n_main:], y[n_main:], num_classes)
        inter, pred_cnt, true_cnt = inter + ti, pred_cnt + tp, true_cnt + tt

    def _true(c):  # target count of class c (0 if class id out of range)
        return true_cnt[c - 1] if 1 <= c < num_classes else jnp.float32(0.0)

    # Matches the torch reference exactly: class_tot = sum(targets==1)+sum(targets==2).
    class_tot = _true(1) + _true(2)

    dice = jnp.float32(0.0)
    for c in range(1, num_classes):
        i = c - 1
        class_dice = (2.0 * inter[i] + smooth) / (pred_cnt[i] + true_cnt[i] + smooth)
        # NOTE: divides by the per-class target count, as the torch code does;
        # a class with zero target pixels yields inf/NaN exactly like the reference.
        weight = class_tot / (true_cnt[i] * (num_classes - 1))
        dice = dice + weight * class_dice
    dice = dice / num_classes
    return 1.0 - dice


# ------------------------------ module-like API -----------------------------


class DSCLoss:
    """JAX/Pallas equivalent of the PyTorch DSCLoss module."""

    def __init__(self, multiclass=False, num_classes=None):
        self.multiclass = multiclass
        self.num_classes = num_classes

    def __call__(self, inputs, targets, smooth=1.0, tile_rows=_MAX_TILE_ROWS):
        if self.multiclass:
            return dsc_loss_multiclass(
                inputs, targets, self.num_classes, smooth=smooth, tile_rows=tile_rows)
        return dsc_loss_binary(inputs, targets, smooth=smooth, tile_rows=tile_rows)


if __name__ == "__main__":
    key = jax.random.PRNGKey(0)
    k1, k2, k3, k4 = jax.random.split(key, 4)

    # ---- binary case: bf16 soft predictions vs int8 binary mask, (2,1,384,384)
    # Large enough (294912 elems) to take the Pallas path with the adaptive
    # tiling (2 slabs x 4 tiles of 288x128), narrow dtypes exercise the
    # low-HBM-traffic path.
    shape_bin = (2, 1, 384, 384)
    inputs_bin = jax.random.uniform(k1, shape_bin, dtype=jnp.bfloat16)
    targets_bin = (jax.random.uniform(k2, shape_bin) > 0.5).astype(jnp.int8)

    loss_bin = DSCLoss(multiclass=False)(inputs_bin, targets_bin)
    loss_bin = jax.block_until_ready(loss_bin)

    # reference check (plain JAX, f32)
    xi = inputs_bin.astype(jnp.float32).reshape(-1)
    yi = targets_bin.astype(jnp.float32).reshape(-1)
    ref_bin = 1.0 - (2.0 * jnp.sum(xi * yi) + 1.0) / (jnp.sum(xi) + jnp.sum(yi) + 1.0)
    assert jnp.allclose(loss_bin, ref_bin, rtol=1e-4, atol=1e-5), (loss_bin, ref_bin)

    # ---- multiclass case: int8 label maps, shape (2, 384, 384), 4 classes
    num_classes = 4
    shape_mc = (2, 384, 384)
    inputs_mc = jax.random.randint(k3, shape_mc, 0, num_classes, jnp.int32).astype(jnp.int8)
    targets_mc = jax.random.randint(k4, shape_mc, 0, num_classes, jnp.int32).astype(jnp.int8)

    loss_mc = DSCLoss(multiclass=True, num_classes=num_classes)(inputs_mc, targets_mc)
    loss_mc = jax.block_until_ready(loss_mc)

    # reference check (plain JAX)
    dice_ref = 0.0
    class_tot = jnp.sum(targets_mc == 1) + jnp.sum(targets_mc == 2)
    for c in range(1, num_classes):
        yp = (inputs_mc == c).astype(jnp.float32)
        yt = (targets_mc == c).astype(jnp.float32)
        inter_r = jnp.sum(yp * yt)
        union_r = jnp.sum(yp) + jnp.sum(yt)
        cdice = (2.0 * inter_r + 1.0) / (union_r + 1.0)
        ccur = jnp.sum(targets_mc == c)
        w = class_tot / (ccur * (num_classes - 1))
        dice_ref = dice_ref + w * cdice
    ref_mc = 1.0 - dice_ref / num_classes
    assert jnp.allclose(loss_mc, ref_mc, rtol=1e-4, atol=1e-5), (loss_mc, ref_mc)

    print("KERNEL_OK")
</pallas_src>

<mosaic_0001>
module attributes {stable_mosaic.version = 11 : i64} {
  func.func @_binary_dsc_kernel(%arg0: i32, %arg1: i32, %arg2: memref<288x128xbf16, #tpu.memory_space<vmem>>, %arg3: memref<288x128xi8, #tpu.memory_space<vmem>>, %arg4: memref<24x128xf32, #tpu.memory_space<vmem>>) attributes {dimension_semantics = [#tpu.dimension_semantics<parallel>, #tpu.dimension_semantics<arbitrary>], iteration_bounds = array<i64: 2, 4>, scalar_prefetch = 0 : i64, scratch_operands = 0 : i64, tpu.core_type = #tpu.core_type<tc>, window_params = [{transform_indices = @transform_0, window_bounds = array<i64: 288, 128>}, {transform_indices = @transform_1, window_bounds = array<i64: 288, 128>}, {transform_indices = @transform_2, window_bounds = array<i64: 24, 128>}]} {
    %c0_i32 = arith.constant 0 : i32
    %0 = arith.cmpi eq, %arg1, %c0_i32 : i32
    %1 = arith.extui %0 : i1 to i32
    %c0_i32_0 = arith.constant 0 : i32
    %2 = arith.cmpi ne, %1, %c0_i32_0 : i32
    scf.if %2 {
      %cst_17 = arith.constant 0.000000e+00 : f32
      %27 = vector.broadcast %cst_17 : f32 to vector<24x128xf32>
      %c0_18 = arith.constant 0 : index
      %c0_19 = arith.constant 0 : index
      %28 = vector.load %arg4[%c0_18, %c0_19] : memref<24x128xf32, #tpu.memory_space<vmem>>, vector<24x128xf32>
      tpu.vector_store %arg4[%c0_18, %c0_19], %27 {strides = array<i32>} : memref<24x128xf32, #tpu.memory_space<vmem>>, vector<24x128xf32>,
    } else {
    }
    %c0 = arith.constant 0 : index
    %c0_1 = arith.constant 0 : index
    %3 = vector.load %arg2[%c0, %c0_1] : memref<288x128xbf16, #tpu.memory_space<vmem>>, vector<288x128xbf16>
    %4 = arith.extf %3 : vector<288x128xbf16> to vector<288x128xf32>
    %c0_2 = arith.constant 0 : index
    %c0_3 = arith.constant 0 : index
    %5 = vector.load %arg3[%c0_2, %c0_3] : memref<288x128xi8, #tpu.memory_space<vmem>>, vector<288x128xi8>
    %c0_i8 = arith.constant 0 : i8
    %6 = vector.broadcast %c0_i8 : i8 to vector<288x128xi8>
    %7 = arith.cmpi ne, %5, %6 : vector<288x128xi8>
    %cst = arith.constant 0.000000e+00 : f32
    %8 = vector.broadcast %cst : f32 to vector<288x128xf32>
    %9 = arith.select %7, %4, %8 : vector<288x128xi1>, vector<288x128xf32>
    %10 = arith.extui %7 : vector<288x128xi1> to vector<288x128xi32>
    %11 = arith.sitofp %10 : vector<288x128xi32> to vector<288x128xf32>
    %c0_4 = arith.constant 0 : index
    %c0_5 = arith.constant 0 : index
    %12 = vector.load %arg4[%c0_4, %c0_5] : memref<24x128xf32, #tpu.memory_space<vmem>>, vector<8x128xf32>
    %13 = vector.shape_cast %9 : vector<288x128xf32> to vector<36x8x128xf32>
    %cst_6 = arith.constant dense<0.000000e+00> : vector<8x128xf32>
    %14 = vector.multi_reduction <add>, %13, %cst_6 [0] : vector<36x8x128xf32> to vector<8x128xf32>
    %15 = arith.addf %12, %14 : vector<8x128xf32>
    %c0_7 = arith.constant 0 : index
    %c0_8 = arith.constant 0 : index
    %16 = vector.load %arg4[%c0_7, %c0_8] : memref<24x128xf32, #tpu.memory_space<vmem>>, vector<8x128xf32>
    tpu.vector_store %arg4[%c0_7, %c0_8], %15 {strides = array<i32>} : memref<24x128xf32, #tpu.memory_space<vmem>>, vector<8x128xf32>,
    %c8 = arith.constant 8 : index
    %c0_9 = arith.constant 0 : index
    %17 = vector.load %arg4[%c8, %c0_9] : memref<24x128xf32, #tpu.memory_space<vmem>>, vector<8x128xf32>
    %18 = vector.shape_cast %4 : vector<288x128xf32> to vector<36x8x128xf32>
    %cst_10 = arith.constant dense<0.000000e+00> : vector<8x128xf32>
    %19 = vector.multi_reduction <add>, %18, %cst_10 [0] : vector<36x8x128xf32> to vector<8x128xf32>
    %20 = arith.addf %17, %19 : vector<8x128xf32>
    %c8_11 = arith.constant 8 : index
    %c0_12 = arith.constant 0 : index
    %21 = vector.load %arg4[%c8_11, %c0_12] : memref<24x128xf32, #tpu.memory_space<vmem>>, vector<8x128xf32>
    tpu.vector_store %arg4[%c8_11, %c0_12], %20 {strides = array<i32>} : memref<24x128xf32, #tpu.memory_space<vmem>>, vector<8x128xf32>,
    %c16 = arith.constant 16 : index
    %c0_13 = arith.constant 0 : index
    %22 = vector.load %arg4[%c16, %c0_13] : memref<24x128xf32, #tpu.memory_space<vmem>>, vector<8x128xf32>
    %23 = vector.shape_cast %11 : vector<288x128xf32> to vector<36x8x128xf32>
    %cst_14 = arith.constant dense<0.000000e+00> : vector<8x128xf32>
    %24 = vector.multi_reduction <add>, %23, %cst_14 [0] : vector<36x8x128xf32> to vector<8x128xf32>
    %25 = arith.addf %22, %24 : vector<8x128xf32>
    %c16_15 = arith.constant 16 : index
    %c0_16 = arith.constant 0 : index
    %26 = vector.load %arg4[%c16_15, %c0_16] : memref<24x128xf32, #tpu.memory_space<vmem>>, vector<8x128xf32>
    tpu.vector_store %arg4[%c16_15, %c0_16], %25 {strides = array<i32>} : memref<24x128xf32, #tpu.memory_space<vmem>>, vector<8x128xf32>,
    return
  }
  func.func @transform_0(%arg0: i32, %arg1: i32) -> (i32, i32) {
    %c4_i32 = arith.constant 4 : i32
    %0 = arith.muli %arg0, %c4_i32 : i32
    %1 = arith.addi %0, %arg1 : i32
    %c0_i32 = arith.constant 0 : i32
    %c0_i32_0 = arith.constant 0 : i32
    return %1, %c0_i32 : i32, i32
  }
  func.func @transform_1(%arg0: i32, %arg1: i32) -> (i32, i32) {
    %c4_i32 = arith.constant 4 : i32
    %0 = arith.muli %arg0, %c4_i32 : i32
    %1 = arith.addi %0, %arg1 : i32
    %c0_i32 = arith.constant 0 : i32
    %c0_i32_0 = arith.constant 0 : i32
    return %1, %c0_i32 : i32, i32
  }
  func.func @transform_2(%arg0: i32, %arg1: i32) -> (i32, i32) {
    %c0_i32 = arith.constant 0 : i32
    %c0_i32_0 = arith.constant 0 : i32
    return %arg0, %c0_i32 : i32, i32
  }
}

</mosaic_0001>

<llo_original>
// kernel: tpu_custom_call.1
$region0: #{tpu_custom_call.1}
  #allocation0 [shape = 'u32[]', space=smem, size = 0x4, offset = 0x4, fixed_abs, tag = 'smem constant byte address 0x4 - core index']
  #allocation1 [shape = 'u32[144,128]{1,0:T(1,128)}', space=vmem, size = 0x12000, scoped, tag = 'internal scratch']
  %s0 = inlined_call_operand.hbm [shape: bf16[2304,128], index: 0, kind: input, shape index: {}]
  %s1 = inlined_call_operand.hbm [shape: s8[2304,128], index: 1, kind: input, shape index: {}]
  %s2 = inlined_call_operand.hbm [shape: f32[48,128], index: 2, kind: output, shape index: {}]
  %s3 = sld [smem:[#allocation0]]
  $region53: #{tpu_custom_call.1} parent=0
    _
  %s5 = ssub.s32 1, %s3
  %s6 = scalar_select 0, %s5, %s3
  $region1: #{tpu_custom_call.1} parent=0
    #allocation2 [shape = 'u8[147456]{0}', space=vmem, size = 0x24000, scoped, tag = 'input window, operand 0']
    #allocation3 [shape = 's32[2]{0}', space=sflag, size = 0x8, scoped, tag = 'scoped memory for tpu_custom_call.1']
    #allocation4 [shape = 's32[2]{0}', space=sflag, size = 0x8, scoped, tag = 'scoped memory for tpu_custom_call.1']
    #allocation5 [shape = 'u8[73728]{0}', space=vmem, size = 0x12000, scoped, tag = 'input window, operand 1']
    #allocation6 [shape = 's32[2]{0}', space=sflag, size = 0x8, scoped, tag = 'scoped memory for tpu_custom_call.1']
    #allocation7 [shape = 'u8[24576]{0}', space=vmem, size = 0x6000, scoped, tag = 'output window, operand 0']
    %7 = vsyncpa [#allocation3], 0
    %s8 = scalar_lea.sflag [#allocation3], 1
    %9 = vsyncpa %s8, 0
    %10 = vsyncpa [#allocation6], 0
    %s11 = scalar_lea.sflag [#allocation6], 1
    %12 = vsyncpa %s11, 0
    %13 = vsyncpa [#allocation4], 0
    %s14 = scalar_lea.sflag [#allocation4], 1
    %15 = vsyncpa %s14, 0
    loop: start=0, step=1, limit=10
    $region2: #{tpu_custom_call.1} parent=1 // loop_pre_header
      _
    $region3: #{tpu_custom_call.1} parent=1 // loop_header
      %s17 = sphi 0, %s21
      %p18 = scmp.ge.s32.totalorder %s17, 10
      %s24 = sphi 0, %s36
      %s25 = sphi 0, %s32
      %s26 = sphi 0, %s24
      %s27 = sphi 0, %s25
      %s28 = sphi 0, %s26
      %s29 = sphi 0, %s27
      %s43 = sphi 0, %s45
      %s46 = sphi 0, %s43
      %s47 = sphi 0, %s46
      %s63 = sphi 0, %s47
      %s73 = sphi 0, %s75
      %s76 = sphi 0, %s73
      %s77 = sphi 0, %s76
      %s93 = sphi 0, %s77
      %s99 = sphi 0, %s101
      %s102 = sphi 0, %s99
      %s103 = sphi 0, %s102
      %s119 = sphi 0, %s103
    $region4: #{tpu_custom_call.1} parent=1 // loop_header_branch
      %20 = sbr.rel (%p18) target = $region8
    $region5: #{tpu_custom_call.1} parent=1 // loop_body
      %s22 = ssub.s32 %s17, 1
      %s23 = ssub.s32 %s17, 2
      %s30 = sadd.s32 1, %s25
      %p31 = scmp.ge.s32.totalorder %s30, 4
      %s32 = scalar_select %p31, 0, %s30
      %s33 = sadd.s32 1, %s24
      %s34 = scalar_select %p31, %s33, %s24
      %p35 = scmp.ge.s32.totalorder %s34, 2
      %s36 = scalar_select %p35, 0, %s34
      %s37 = smul.u32 %s24, 4
      %s38 = sadd.s32 %s37, %s25
      %s39 = smul.u32 %s36, 4
      %s40 = sadd.s32 %s39, %s32
      %s41 = ssub.s32 %s38, %s40
      %p42 = scmp.eq.s32.totalorder %s41, 0
      %s44 = sadd.s32 %s43, 1
      %s45 = scalar_select %p42, %s43, %s44
      %p48 = pneg %p42
      %p49 = scmp.eq.s32.totalorder %s17, 7
      %p50 = por %p48, %p49
      %p51 = scmp.ne.s32.totalorder %s43, %s46
      %p52 = scmp.eq.s32.totalorder %s17, 0
      %p53 = por %p51, %p52
      %p54 = scmp.ne.s32.totalorder %s43, %s46
      %p55 = scmp.eq.s32.totalorder %s22, 7
      %p56 = por %p54, %p55
      %p57 = scmp.ne.s32.totalorder %s46, %s47
      %p58 = scmp.eq.s32.totalorder %s22, 0
      %p59 = por %p57, %p58
      %p60 = scmp.ne.s32.totalorder %s46, %s47
      %p61 = scmp.eq.s32.totalorder %s23, 7
      %p62 = por %p60, %p61
      %p64 = scmp.ne.s32.totalorder %s47, %s63
      %p65 = scmp.eq.s32.totalorder %s23, 0
      %p66 = por %p64, %p65
      %s67 = smul.u32 %s24, 4
      %s68 = sadd.s32 %s67, %s25
      %s69 = smul.u32 %s36, 4
      %s70 = sadd.s32 %s69, %s32
      %s71 = ssub.s32 %s68, %s70
      %p72 = scmp.eq.s32.totalorder %s71, 0
      %s74 = sadd.s32 %s73, 1
      %s75 = scalar_select %p72, %s73, %s74
      %p78 = pneg %p72
      %p79 = scmp.eq.s32.totalorder %s17, 7
      %p80 = por %p78, %p79
      %p81 = scmp.ne.s32.totalorder %s73, %s76
      %p82 = scmp.eq.s32.totalorder %s17, 0
      %p83 = por %p81, %p82
      %p84 = scmp.ne.s32.totalorder %s73, %s76
      %p85 = scmp.eq.s32.totalorder %s22, 7
      %p86 = por %p84, %p85
      %p87 = scmp.ne.s32.totalorder %s76, %s77
      %p88 = scmp.eq.s32.totalorder %s22, 0
      %p89 = por %p87, %p88
      %p90 = scmp.ne.s32.totalorder %s76, %s77
      %p91 = scmp.eq.s32.totalorder %s23, 7
      %p92 = por %p90, %p91
      %p94 = scmp.ne.s32.totalorder %s77, %s93
      %p95 = scmp.eq.s32.totalorder %s23, 0
      %p96 = por %p94, %p95
      %s97 = ssub.s32 %s24, %s36
      %p98 = scmp.eq.s32.totalorder %s97, 0
      %s100 = sadd.s32 %s99, 1
      %s101 = scalar_select %p98, %s99, %s100
      %p104 = pneg %p98
      %p105 = scmp.eq.s32.totalorder %s17, 7
      %p106 = por %p104, %p105
      %p107 = scmp.ne.s32.totalorder %s99, %s102
      %p108 = scmp.eq.s32.totalorder %s17, 0
      %p109 = por %p107, %p108
      %p110 = scmp.ne.s32.totalorder %s99, %s102
      %p111 = scmp.eq.s32.totalorder %s22, 7
      %p112 = por %p110, %p111
      %p113 = scmp.ne.s32.totalorder %s102, %s103
      %p114 = scmp.eq.s32.totalorder %s22, 0
      %p115 = por %p113, %p114
      %p116 = scmp.ne.s32.totalorder %s102, %s103
      %p117 = scmp.eq.s32.totalorder %s23, 7
      %p118 = por %p116, %p117
      %p120 = scmp.ne.s32.totalorder %s103, %s119
      %p121 = scmp.eq.s32.totalorder %s23, 0
      %p122 = por %p120, %p121
      %p123 = scmp.le.s32.totalorder 1, %s17
      %p124 = scmp.lt.s32.totalorder %s17, 9
      %p125 = pnand %p123, %p124
      %p126 = pneg %p125
      // Predicated region
      $region9: #{tpu_custom_call.1} parent=5 // pred_check
        _
      $region10: #{tpu_custom_call.1} parent=5 // pred_check_branch
        %128 = sbr.rel (%p125) target = $region12
      $region11: #{tpu_custom_call.1} parent=5 // pred_region
        %s129 = ssub.s32 %s17, 1
      $region12: #{tpu_custom_call.1} parent=5 // pred_fallthru
        _
      %p130 = scmp.lt.s32.totalorder %s17, 8
      // Predicated region
      $region13: #{tpu_custom_call.1} parent=5 // pred_check
        %p131 = pneg %p130
      $region14: #{tpu_custom_call.1} parent=5 // pred_check_branch
        %133 = sbr.rel (%p131) target = $region16
      $region15: #{tpu_custom_call.1} parent=5 // pred_region
        // Predicated region
        $region17: #{tpu_custom_call.1} parent=15 // pred_check
          %p134 = pneg %p53
        $region18: #{tpu_custom_call.1} parent=15 // pred_check_branch
          %136 = sbr.rel (%p134) target = $region20
        $region19: #{tpu_custom_call.1} parent=15 // pred_region
          %s137 = sand.u32 %s43, 1
          %s138 = scalar_lea.sflag [#allocation3], %s137
          %s139 = sand.u32 %s43, 1
          %s140 = smul.addr %s139, 144
          %s141 = scalar_lea.vmem [#allocation2], %s140
          %s142 = smul.u32 %s24, 4
          %s143 = sadd.s32 %s142, %s25
          %s144 = smul.u32 36, %s143
          %s146 = ssub.s32 2304, 2304
          %147 = vsyncadd %s138, %s146
          %s148 = smul.addr %s144, 64
          %s149 = scalar_lea.hbm %s0, %s148
          %s150 = sshll.u32 %s141, 4
          %s151 = int_to_ptr.vmem [resolvable:$true] %s150
          %156 = dma.hbm_to_vmem [thread:$0]  %s149, 2304, %s151, %s138, 64, 64, 4
        $region20: #{tpu_custom_call.1} parent=15 // pred_fallthru
          _
        // Predicated region
        $region21: #{tpu_custom_call.1} parent=15 // pred_check
          %p157 = pneg %p83
        $region22: #{tpu_custom_call.1} parent=15 // pred_check_branch
          %159 = sbr.rel (%p157) target = $region24
        $region23: #{tpu_custom_call.1} parent=15 // pred_region
          %s160 = sand.u32 %s73, 1
          %s161 = scalar_lea.sflag [#allocation6], %s160
          %s162 = sand.u32 %s73, 1
          %s163 = smul.addr %s162, 72
          %s164 = scalar_lea.vmem [#allocation5], %s163
          %s165 = smul.u32 %s24, 4
          %s166 = sadd.s32 %s165, %s25
          %s167 = smul.u32 9, %s166
          %s169 = ssub.s32 1152, 1152
          %170 = vsyncadd %s161, %s169
          %s171 = smul.addr %s167, 128
          %s172 = scalar_lea.hbm %s1, %s171
          %s173 = sshll.u32 %s164, 4
          %s174 = int_to_ptr.vmem [resolvable:$true] %s173
          %179 = dma.hbm_to_vmem [thread:$0]  %s172, 1152, %s174, %s161, 128, 128, 8
        $region24: #{tpu_custom_call.1} parent=15 // pred_fallthru
          _
      $region16: #{tpu_custom_call.1} parent=5 // pred_fallthru
        _
      %p180 = scmp.le.s32.totalorder 1, %s17
      %p181 = scmp.lt.s32.totalorder %s17, 9
      %p182 = pnand %p180, %p181
      %p183 = pneg %p182
      // Predicated region
      $region25: #{tpu_custom_call.1} parent=5 // pred_check
        _
      $region26: #{tpu_custom_call.1} parent=5 // pred_check_branch
        %185 = sbr.rel (%p182) target = $region28
      $region27: #{tpu_custom_call.1} parent=5 // pred_region
        %s186 = ssub.s32 %s17, 1
        %s187 = sand.u32 %s46, 1
        %s188 = scalar_lea.sflag [#allocation3], %s187
        %s189 = sand.u32 %s46, 1
        %s190 = smul.addr %s189, 144
        %s191 = scalar_lea.vmem [#allocation2], %s190
        // Predicated region
        $region29: #{tpu_custom_call.1} parent=27 // pred_check
          %p192 = pneg %p59
        $region30: #{tpu_custom_call.1} parent=27 // pred_check_branch
          %194 = sbr.rel (%p192) target = $region32
        $region31: #{tpu_custom_call.1} parent=27 // pred_region
          %195 = dma.done %s188, 2304
        $region32: #{tpu_custom_call.1} parent=27 // pred_fallthru
          _
        %s196 = sand.u32 %s76, 1
        %s197 = scalar_lea.sflag [#allocation6], %s196
        %s198 = sand.u32 %s76, 1
        %s199 = smul.addr %s198, 72
        %s200 = scalar_lea.vmem [#allocation5], %s199
        // Predicated region
        $region33: #{tpu_custom_call.1} parent=27 // pred_check
          %p201 = pneg %p89
        $region34: #{tpu_custom_call.1} parent=27 // pred_check_branch
          %203 = sbr.rel (%p201) target = $region36
        $region35: #{tpu_custom_call.1} parent=27 // pred_region
          %204 = dma.done %s197, 1152
        $region36: #{tpu_custom_call.1} parent=27 // pred_fallthru
          _
        %s205 = sand.u32 %s46, 1
        %s206 = scalar_lea.sflag [#allocation3], %s205
        %s207 = sand.u32 %s46, 1
        %s208 = smul.addr %s207, 144
        %s209 = scalar_lea.vmem [#allocation2], %s208
        %p210 = pneg %p59
        %p211 = pneg %p56
        %s212 = sand.u32 %s76, 1
        %s213 = scalar_lea.sflag [#allocation6], %s212
        %s214 = sand.u32 %s76, 1
        %s215 = smul.addr %s214, 72
        %s216 = scalar_lea.vmem [#allocation5], %s215
        %p217 = pneg %p89
        %p218 = pneg %p86
        %p219 = pneg %p115
        %p220 = pneg %p112
        %s221 = sand.u32 %s102, 1
        %s222 = scalar_lea.sflag [#allocation4], %s221
        %s223 = sand.u32 %s102, 1
        %s224 = smul.addr %s223, 24
        %s225 = scalar_lea.vmem [#allocation7], %s224
        %s226 = smul.u32 %s26, 4
        %s227 = sadd.s32 %s226, %s27
        %s228 = smul.u32 36, %s227
        %s229 = smul.u32 %s26, 4
        %s230 = sadd.s32 %s229, %s27
        %s231 = smul.u32 9, %s230
        %s232 = smul.u32 3, %s26
        %p235 = scmp.eq.s32.totalorder %s27, 0
        // Predicated region
        $region37: #{tpu_custom_call.1} parent=27 // pred_check
          %p236 = pneg %p235
        $region38: #{tpu_custom_call.1} parent=27 // pred_check_branch
          %238 = sbr.rel (%p236) target = $region40
        $region39: #{tpu_custom_call.1} parent=27 // pred_region
          %239 = vst [vmem:[%s225] sm:$0xff] 0.0
          %240 = vst [vmem:[%s225 + $0x8] sm:$0xff] 0.0
          %241 = vst [vmem:[%s225 + $0x10] sm:$0xff] 0.0
        $region40: #{tpu_custom_call.1} parent=27 // pred_fallthru
          _
        %v242 = vld [vmem:[%s191] sm:$0xf]
        %v243 = vld [vmem:[%s191 + $0x4] sm:$0xf]
        %v244 = vld [vmem:[%s191 + $0x8] sm:$0xf]
        %v245 = vld [vmem:[%s191 + $0xc] sm:$0xf]
        %v246 = vld [vmem:[%s191 + $0x10] sm:$0xf]
        %v247 = vld [vmem:[%s191 + $0x14] sm:$0xf]
        %v248 = vld [vmem:[%s191 + $0x18] sm:$0xf]
        %v249 = vld [vmem:[%s191 + $0x1c] sm:$0xf]
        %v250 = vld [vmem:[%s191 + $0x20] sm:$0xf]
        %v251 = vld [vmem:[%s191 + $0x24] sm:$0xf]
        %v252 = vld [vmem:[%s191 + $0x28] sm:$0xf]
        %v253 = vld [vmem:[%s191 + $0x2c] sm:$0xf]
        %v254 = vld [vmem:[%s191 + $0x30] sm:$0xf]
        %v255 = vld [vmem:[%s191 + $0x34] sm:$0xf]
        %v256 = vld [vmem:[%s191 + $0x38] sm:$0xf]
        %v257 = vld [vmem:[%s191 + $0x3c] sm:$0xf]
        %v258 = vld [vmem:[%s191 + $0x40] sm:$0xf]
        %v259 = vld [vmem:[%s191 + $0x44] sm:$0xf]
        %v260 = vld [vmem:[%s191 + $0x48] sm:$0xf]
        %v261 = vld [vmem:[%s191 + $0x4c] sm:$0xf]
        %v262 = vld [vmem:[%s191 + $0x50] sm:$0xf]
        %v263 = vld [vmem:[%s191 + $0x54] sm:$0xf]
        %v264 = vld [vmem:[%s191 + $0x58] sm:$0xf]
        %v265 = vld [vmem:[%s191 + $0x5c] sm:$0xf]
        %v266 = vld [vmem:[%s191 + $0x60] sm:$0xf]
        %v267 = vld [vmem:[%s191 + $0x64] sm:$0xf]
        %v268 = vld [vmem:[%s191 + $0x68] sm:$0xf]
        %v269 = vld [vmem:[%s191 + $0x6c] sm:$0xf]
        %v270 = vld [vmem:[%s191 + $0x70] sm:$0xf]
        %v271 = vld [vmem:[%s191 + $0x74] sm:$0xf]
        %v272 = vld [vmem:[%s191 + $0x78] sm:$0xf]
        %v273 = vld [vmem:[%s191 + $0x7c] sm:$0xf]
        %v274 = vld [vmem:[%s191 + $0x80] sm:$0xf]
        %v275 = vld [vmem:[%s191 + $0x84] sm:$0xf]
        %v276 = vld [vmem:[%s191 + $0x88] sm:$0xf]
        %v277 = vld [vmem:[%s191 + $0x8c] sm:$0xf]
        %v278 = vunpack.c.l.bf16 %v242
        %v279 = vunpack.c.l.bf16 %v243
        %v280 = vunpack.c.l.bf16 %v244
        %v281 = vunpack.c.l.bf16 %v245
        %v282 = vunpack.c.l.bf16 %v246
        %v283 = vunpack.c.l.bf16 %v247
        %v284 = vunpack.c.l.bf16 %v248
        %v285 = vunpack.c.l.bf16 %v249
        %v286 = vunpack.c.l.bf16 %v250
        %v287 = vunpack.c.l.bf16 %v251
        %v288 = vunpack.c.l.bf16 %v252
        %v289 = vunpack.c.l.bf16 %v253
        %v290 = vunpack.c.l.bf16 %v254
        %v291 = vunpack.c.l.bf16 %v255
        %v292 = vunpack.c.l.bf16 %v256
        %v293 = vunpack.c.l.bf16 %v257
        %v294 = vunpack.c.l.bf16 %v258
        %v295 = vunpack.c.l.bf16 %v259
        %v296 = vunpack.c.l.bf16 %v260
        %v297 = vunpack.c.l.bf16 %v261
        %v298 = vunpack.c.l.bf16 %v262
        %v299 = vunpack.c.l.bf16 %v263
        %v300 = vunpack.c.l.bf16 %v264
        %v301 = vunpack.c.l.bf16 %v265
        %v302 = vunpack.c.l.bf16 %v266
        %v303 = vunpack.c.l.bf16 %v267
        %v304 = vunpack.c.l.bf16 %v268
        %v305 = vunpack.c.l.bf16 %v269
        %v306 = vunpack.c.l.bf16 %v270
        %v307 = vunpack.c.l.bf16 %v271
        %v308 = vunpack.c.l.bf16 %v272
        %v309 = vunpack.c.l.bf16 %v273
        %v310 = vunpack.c.l.bf16 %v274
        %v311 = vunpack.c.l.bf16 %v275
        %v312 = vunpack.c.l.bf16 %v276
        %v313 = vunpack.c.l.bf16 %v277
        %v314 = vld [vmem:[%s200] sm:$0xff]
        %v315 = vld [vmem:[%s200 + $0x8] sm:$0xff]
        %v316 = vld [vmem:[%s200 + $0x10] sm:$0xff]
        %v317 = vld [vmem:[%s200 + $0x18] sm:$0xff]
        %v318 = vld [vmem:[%s200 + $0x20] sm:$0xff]
        %v319 = vld [vmem:[%s200 + $0x28] sm:$0xff]
        %v320 = vld [vmem:[%s200 + $0x30] sm:$0xff]
        %v321 = vld [vmem:[%s200 + $0x38] sm:$0xff]
        %v322 = vld [vmem:[%s200 + $0x40] sm:$0xff]
        %vm323 = vnez %v314
        %vm324 = vnez %v315
        %vm325 = vnez %v316
        %vm326 = vnez %v317
        %vm327 = vnez %v318
        %vm328 = vnez %v319
        %vm329 = vnez %v320
        %vm330 = vnez %v321
        %vm331 = vnez %v322
        %v332 = vsel %vm323, 16843009, 0
        %v333 = vsel %vm324, 16843009, 0
        %v334 = vsel %vm325, 16843009, 0
        %v335 = vsel %vm326, 16843009, 0
        %v336 = vsel %vm327, 16843009, 0
        %v337 = vsel %vm328, 16843009, 0
        %v338 = vsel %vm329, 16843009, 0
        %v339 = vsel %vm330, 16843009, 0
        %v340 = vsel %vm331, 16843009, 0
        %v341 = vunpack.c.0.s8 %v332
        %v342 = vunpack.c.1.s8 %v332
        %v343 = vunpack.c.2.s8 %v332
        %v344 = vunpack.c.3.s8 %v332
        %v345 = vunpack.c.0.s8 %v333
        %v346 = vunpack.c.1.s8 %v333
        %v347 = vunpack.c.2.s8 %v333
        %v348 = vunpack.c.3.s8 %v333
        %v349 = vunpack.c.0.s8 %v334
        %v350 = vunpack.c.1.s8 %v334
        %v351 = vunpack.c.2.s8 %v334
        %v352 = vunpack.c.3.s8 %v334
        %v353 = vunpack.c.0.s8 %v335
        %v354 = vunpack.c.1.s8 %v335
        %v355 = vunpack.c.2.s8 %v335
        %v356 = vunpack.c.3.s8 %v335
        %v357 = vunpack.c.0.s8 %v336
        %v358 = vunpack.c.1.s8 %v336
        %v359 = vunpack.c.2.s8 %v336
        %v360 = vunpack.c.3.s8 %v336
        %v361 = vunpack.c.0.s8 %v337
        %v362 = vunpack.c.1.s8 %v337
        %v363 = vunpack.c.2.s8 %v337
        %v364 = vunpack.c.3.s8 %v337
        %v365 = vunpack.c.0.s8 %v338
        %v366 = vunpack.c.1.s8 %v338
        %v367 = vunpack.c.2.s8 %v338
        %v368 = vunpack.c.3.s8 %v338
        %v369 = vunpack.c.0.s8 %v339
        %v370 = vunpack.c.1.s8 %v339
        %v371 = vunpack.c.2.s8 %v339
        %v372 = vunpack.c.3.s8 %v339
        %v373 = vunpack.c.0.s8 %v340
        %v374 = vunpack.c.1.s8 %v340
        %v375 = vunpack.c.2.s8 %v340
        %v376 = vunpack.c.3.s8 %v340
        %v377 = vpack.c.b16 %v341, %v341
        %v378 = vpack.c.b8 %v377, %v377
        %v379 = vpack.c.b16 %v342, %v342
        %v380 = vpack.c.b8 %v379, %v379
        %v381 = vpack.c.b16 %v343, %v343
        %v382 = vpack.c.b8 %v381, %v381
        %v383 = vpack.c.b16 %v344, %v344
        %v384 = vpack.c.b8 %v383, %v383
        %v385 = vpack.c.b16 %v345, %v345
        %v386 = vpack.c.b8 %v385, %v385
        %v387 = vpack.c.b16 %v346, %v346
        %v388 = vpack.c.b8 %v387, %v387
        %v389 = vpack.c.b16 %v347, %v347
        %v390 = vpack.c.b8 %v389, %v389
        %v391 = vpack.c.b16 %v348, %v348
        %v392 = vpack.c.b8 %v391, %v391
        %v393 = vpack.c.b16 %v349, %v349
        %v394 = vpack.c.b8 %v393, %v393
        %v395 = vpack.c.b16 %v350, %v350
        %v396 = vpack.c.b8 %v395, %v395
        %v397 = vpack.c.b16 %v351, %v351
        %v398 = vpack.c.b8 %v397, %v397
        %v399 = vpack.c.b16 %v352, %v352
        %v400 = vpack.c.b8 %v399, %v399
        %v401 = vpack.c.b16 %v353, %v353
        %v402 = vpack.c.b8 %v401, %v401
        %v403 = vpack.c.b16 %v354, %v354
        %v404 = vpack.c.b8 %v403, %v403
        %v405 = vpack.c.b16 %v355, %v355
        %v406 = vpack.c.b8 %v405, %v405
        %v407 = vpack.c.b16 %v356, %v356
        %v408 = vpack.c.b8 %v407, %v407
        %v409 = vpack.c.b16 %v357, %v357
        %v410 = vpack.c.b8 %v409, %v409
        %v411 = vpack.c.b16 %v358, %v358
        %v412 = vpack.c.b8 %v411, %v411
        %v413 = vpack.c.b16 %v359, %v359
        %v414 = vpack.c.b8 %v413, %v413
        %v415 = vpack.c.b16 %v360, %v360
        %v416 = vpack.c.b8 %v415, %v415
        %v417 = vpack.c.b16 %v361, %v361
        %v418 = vpack.c.b8 %v417, %v417
        %v419 = vpack.c.b16 %v362, %v362
        %v420 = vpack.c.b8 %v419, %v419
        %v421 = vpack.c.b16 %v363, %v363
        %v422 = vpack.c.b8 %v421, %v421
        %v423 = vpack.c.b16 %v364, %v364
        %v424 = vpack.c.b8 %v423, %v423
        %v425 = vpack.c.b16 %v365, %v365
        %v426 = vpack.c.b8 %v425, %v425
        %v427 = vpack.c.b16 %v366, %v366
        %v428 = vpack.c.b8 %v427, %v427
        %v429 = vpack.c.b16 %v367, %v367
        %v430 = vpack.c.b8 %v429, %v429
        %v431 = vpack.c.b16 %v368, %v368
        %v432 = vpack.c.b8 %v431, %v431
        %v433 = vpack.c.b16 %v369, %v369
        %v434 = vpack.c.b8 %v433, %v433
        %v435 = vpack.c.b16 %v370, %v370
        %v436 = vpack.c.b8 %v435, %v435
        %v437 = vpack.c.b16 %v371, %v371
        %v438 = vpack.c.b8 %v437, %v437
        %v439 = vpack.c.b16 %v372, %v372
        %v440 = vpack.c.b8 %v439, %v439
        %v441 = vpack.c.b16 %v373, %v373
        %v442 = vpack.c.b8 %v441, %v441
        %v443 = vpack.c.b16 %v374, %v374
        %v444 = vpack.c.b8 %v443, %v443
        %v445 = vpack.c.b16 %v375, %v375
        %v446 = vpack.c.b8 %v445, %v445
        %v447 = vpack.c.b16 %v376, %v376
        %v448 = vpack.c.b8 %v447, %v447
        %vm449 = vnez %v378
        %vm450 = vnez %v380
        %vm451 = vnez %v382
        %vm452 = vnez %v384
        %vm453 = vnez %v386
        %vm454 = vnez %v388
        %vm455 = vnez %v390
        %vm456 = vnez %v392
        %vm457 = vnez %v394
        %vm458 = vnez %v396
        %vm459 = vnez %v398
        %vm460 = vnez %v400
        %vm461 = vnez %v402
        %vm462 = vnez %v404
        %vm463 = vnez %v406
        %vm464 = vnez %v408
        %vm465 = vnez %v410
        %vm466 = vnez %v412
        %vm467 = vnez %v414
        %vm468 = vnez %v416
        %vm469 = vnez %v418
        %vm470 = vnez %v420
        %vm471 = vnez %v422
        %vm472 = vnez %v424
        %vm473 = vnez %v426
        %vm474 = vnez %v428
        %vm475 = vnez %v430
        %vm476 = vnez %v432
        %vm477 = vnez %v434
        %vm478 = vnez %v436
        %vm479 = vnez %v438
        %vm480 = vnez %v440
        %vm481 = vnez %v442
        %vm482 = vnez %v444
        %vm483 = vnez %v446
        %vm484 = vnez %v448
        %v485 = vsel %vm449, 16843009, 0
        %v486 = vsel %vm450, 16843009, 0
        %v487 = vsel %vm451, 16843009, 0
        %v488 = vsel %vm452, 16843009, 0
        %v489 = vsel %vm453, 16843009, 0
        %v490 = vsel %vm454, 16843009, 0
        %v491 = vsel %vm455, 16843009, 0
        %v492 = vsel %vm456, 16843009, 0
        %v493 = vsel %vm457, 16843009, 0
        %v494 = vsel %vm458, 16843009, 0
        %v495 = vsel %vm459, 16843009, 0
        %v496 = vsel %vm460, 16843009, 0
        %v497 = vsel %vm461, 16843009, 0
        %v498 = vsel %vm462, 16843009, 0
        %v499 = vsel %vm463, 16843009, 0
        %v500 = vsel %vm464, 16843009, 0
        %v501 = vsel %vm465, 16843009, 0
        %v502 = vsel %vm466, 16843009, 0
        %v503 = vsel %vm467, 16843009, 0
        %v504 = vsel %vm468, 16843009, 0
        %v505 = vsel %vm469, 16843009, 0
        %v506 = vsel %vm470, 16843009, 0
        %v507 = vsel %vm471, 16843009, 0
        %v508 = vsel %vm472, 16843009, 0
        %v509 = vsel %vm473, 16843009, 0
        %v510 = vsel %vm474, 16843009, 0
        %v511 = vsel %vm475, 16843009, 0
        %v512 = vsel %vm476, 16843009, 0
        %v513 = vsel %vm477, 16843009, 0
        %v514 = vsel %vm478, 16843009, 0
        %v515 = vsel %vm479, 16843009, 0
        %v516 = vsel %vm480, 16843009, 0
        %v517 = vsel %vm481, 16843009, 0
        %v518 = vsel %vm482, 16843009, 0
        %v519 = vsel %vm483, 16843009, 0
        %v520 = vsel %vm484, 16843009, 0
        %v521 = vunpack.c.0.s8 %v485
        %v522 = vunpack.c.0.s8 %v486
        %v523 = vunpack.c.0.s8 %v487
        %v524 = vunpack.c.0.s8 %v488
        %v525 = vunpack.c.0.s8 %v489
        %v526 = vunpack.c.0.s8 %v490
        %v527 = vunpack.c.0.s8 %v491
        %v528 = vunpack.c.0.s8 %v492
        %v529 = vunpack.c.0.s8 %v493
        %v530 = vunpack.c.0.s8 %v494
        %v531 = vunpack.c.0.s8 %v495
        %v532 = vunpack.c.0.s8 %v496
        %v533 = vunpack.c.0.s8 %v497
        %v534 = vunpack.c.0.s8 %v498
        %v535 = vunpack.c.0.s8 %v499
        %v536 = vunpack.c.0.s8 %v500
        %v537 = vunpack.c.0.s8 %v501
        %v538 = vunpack.c.0.s8 %v502
        %v539 = vunpack.c.0.s8 %v503
        %v540 = vunpack.c.0.s8 %v504
        %v541 = vunpack.c.0.s8 %v505
        %v542 = vunpack.c.0.s8 %v506
        %v543 = vunpack.c.0.s8 %v507
        %v544 = vunpack.c.0.s8 %v508
        %v545 = vunpack.c.0.s8 %v509
        %v546 = vunpack.c.0.s8 %v510
        %v547 = vunpack.c.0.s8 %v511
        %v548 = vunpack.c.0.s8 %v512
        %v549 = vunpack.c.0.s8 %v513
        %v550 = vunpack.c.0.s8 %v514
        %v551 = vunpack.c.0.s8 %v515
        %v552 = vunpack.c.0.s8 %v516
        %v553 = vunpack.c.0.s8 %v517
        %v554 = vunpack.c.0.s8 %v518
        %v555 = vunpack.c.0.s8 %v519
        %v556 = vunpack.c.0.s8 %v520
        %vm557 = vcmp.ne.s32.totalorder %v521, 0
        %vm558 = vcmp.ne.s32.totalorder %v522, 0
        %vm559 = vcmp.ne.s32.totalorder %v523, 0
        %vm560 = vcmp.ne.s32.totalorder %v524, 0
        %vm561 = vcmp.ne.s32.totalorder %v525, 0
        %vm562 = vcmp.ne.s32.totalorder %v526, 0
        %vm563 = vcmp.ne.s32.totalorder %v527, 0
        %vm564 = vcmp.ne.s32.totalorder %v528, 0
        %vm565 = vcmp.ne.s32.totalorder %v529, 0
        %vm566 = vcmp.ne.s32.totalorder %v530, 0
        %vm567 = vcmp.ne.s32.totalorder %v531, 0
        %vm568 = vcmp.ne.s32.totalorder %v532, 0
        %vm569 = vcmp.ne.s32.totalorder %v533, 0
        %vm570 = vcmp.ne.s32.totalorder %v534, 0
        %vm571 = vcmp.ne.s32.totalorder %v535, 0
        %vm572 = vcmp.ne.s32.totalorder %v536, 0
        %vm573 = vcmp.ne.s32.totalorder %v537, 0
        %vm574 = vcmp.ne.s32.totalorder %v538, 0
        %vm575 = vcmp.ne.s32.totalorder %v539, 0
        %vm576 = vcmp.ne.s32.totalorder %v540, 0
        %vm577 = vcmp.ne.s32.totalorder %v541, 0
        %vm578 = vcmp.ne.s32.totalorder %v542, 0
        %vm579 = vcmp.ne.s32.totalorder %v543, 0
        %vm580 = vcmp.ne.s32.totalorder %v544, 0
        %vm581 = vcmp.ne.s32.totalorder %v545, 0
        %vm582 = vcmp.ne.s32.totalorder %v546, 0
        %vm583 = vcmp.ne.s32.totalorder %v547, 0
        %vm584 = vcmp.ne.s32.totalorder %v548, 0
        %vm585 = vcmp.ne.s32.totalorder %v549, 0
        %vm586 = vcmp.ne.s32.totalorder %v550, 0
        %vm587 = vcmp.ne.s32.totalorder %v551, 0
        %vm588 = vcmp.ne.s32.totalorder %v552, 0
        %vm589 = vcmp.ne.s32.totalorder %v553, 0
        %vm590 = vcmp.ne.s32.totalorder %v554, 0
        %vm591 = vcmp.ne.s32.totalorder %v555, 0
        %vm592 = vcmp.ne.s32.totalorder %v556, 0
        %v593 = vsel %vm557, %v278, 0.0
        %v594 = vsel %vm558, %v279, 0.0
        %v595 = vsel %vm559, %v280, 0.0
        %v596 = vsel %vm560, %v281, 0.0
        %v597 = vsel %vm561, %v282, 0.0
        %v598 = vsel %vm562, %v283, 0.0
        %v599 = vsel %vm563, %v284, 0.0
        %v600 = vsel %vm564, %v285, 0.0
        %v601 = vsel %vm565, %v286, 0.0
        %v602 = vsel %vm566, %v287, 0.0
        %v603 = vsel %vm567, %v288, 0.0
        %v604 = vsel %vm568, %v289, 0.0
        %v605 = vsel %vm569, %v290, 0.0
        %v606 = vsel %vm570, %v291, 0.0
        %v607 = vsel %vm571, %v292, 0.0
        %v608 = vsel %vm572, %v293, 0.0
        %v609 = vsel %vm573, %v294, 0.0
        %v610 = vsel %vm574, %v295, 0.0
        %v611 = vsel %vm575, %v296, 0.0
        %v612 = vsel %vm576, %v297, 0.0
        %v613 = vsel %vm577, %v298, 0.0
        %v614 = vsel %vm578, %v299, 0.0
        %v615 = vsel %vm579, %v300, 0.0
        %v616 = vsel %vm580, %v301, 0.0
        %v617 = vsel %vm581, %v302, 0.0
        %v618 = vsel %vm582, %v303, 0.0
        %v619 = vsel %vm583, %v304, 0.0
        %v620 = vsel %vm584, %v305, 0.0
        %v621 = vsel %vm585, %v306, 0.0
        %v622 = vsel %vm586, %v307, 0.0
        %v623 = vsel %vm587, %v308, 0.0
        %v624 = vsel %vm588, %v309, 0.0
        %v625 = vsel %vm589, %v310, 0.0
        %v626 = vsel %vm590, %v311, 0.0
        %v627 = vsel %vm591, %v312, 0.0
        %v628 = vsel %vm592, %v313, 0.0
        %v629 = vsel %vm557, 1, 0
        %v630 = vsel %vm558, 1, 0
        %v631 = vsel %vm559, 1, 0
        %v632 = vsel %vm560, 1, 0
        %v633 = vsel %vm561, 1, 0
        %v634 = vsel %vm562, 1, 0
        %v635 = vsel %vm563, 1, 0
        %v636 = vsel %vm564, 1, 0
        %v637 = vsel %vm565, 1, 0
        %v638 = vsel %vm566, 1, 0
        %v639 = vsel %vm567, 1, 0
        %v640 = vsel %vm568, 1, 0
        %v641 = vsel %vm569, 1, 0
        %v642 = vsel %vm570, 1, 0
        %v643 = vsel %vm571, 1, 0
        %v644 = vsel %vm572, 1, 0
        %v645 = vsel %vm573, 1, 0
        %v646 = vsel %vm574, 1, 0
        %v647 = vsel %vm575, 1, 0
        %v648 = vsel %vm576, 1, 0
        %v649 = vsel %vm577, 1, 0
        %v650 = vsel %vm578, 1, 0
        %v651 = vsel %vm579, 1, 0
        %v652 = vsel %vm580, 1, 0
        %v653 = vsel %vm581, 1, 0
        %v654 = vsel %vm582, 1, 0
        %v655 = vsel %vm583, 1, 0
        %v656 = vsel %vm584, 1, 0
        %v657 = vsel %vm585, 1, 0
        %v658 = vsel %vm586, 1, 0
        %v659 = vsel %vm587, 1, 0
        %v660 = vsel %vm588, 1, 0
        %v661 = vsel %vm589, 1, 0
        %v662 = vsel %vm590, 1, 0
        %v663 = vsel %vm591, 1, 0
        %v664 = vsel %vm592, 1, 0
        %v665 = vcvt.s32.f32 %v629
        %v666 = vcvt.s32.f32 %v630
        %v667 = vcvt.s32.f32 %v631
        %v668 = vcvt.s32.f32 %v632
        %v669 = vcvt.s32.f32 %v633
        %v670 = vcvt.s32.f32 %v634
        %v671 = vcvt.s32.f32 %v635
        %v672 = vcvt.s32.f32 %v636
        %v673 = vcvt.s32.f32 %v637
        %v674 = vcvt.s32.f32 %v638
        %v675 = vcvt.s32.f32 %v639
        %v676 = vcvt.s32.f32 %v640
        %v677 = vcvt.s32.f32 %v641
        %v678 = vcvt.s32.f32 %v642
        %v679 = vcvt.s32.f32 %v643
        %v680 = vcvt.s32.f32 %v644
        %v681 = vcvt.s32.f32 %v645
        %v682 = vcvt.s32.f32 %v646
        %v683 = vcvt.s32.f32 %v647
        %v684 = vcvt.s32.f32 %v648
        %v685 = vcvt.s32.f32 %v649
        %v686 = vcvt.s32.f32 %v650
        %v687 = vcvt.s32.f32 %v651
        %v688 = vcvt.s32.f32 %v652
        %v689 = vcvt.s32.f32 %v653
        %v690 = vcvt.s32.f32 %v654
        %v691 = vcvt.s32.f32 %v655
        %v692 = vcvt.s32.f32 %v656
        %v693 = vcvt.s32.f32 %v657
        %v694 = vcvt.s32.f32 %v658
        %v695 = vcvt.s32.f32 %v659
        %v696 = vcvt.s32.f32 %v660
        %v697 = vcvt.s32.f32 %v661
        %v698 = vcvt.s32.f32 %v662
        %v699 = vcvt.s32.f32 %v663
        %v700 = vcvt.s32.f32 %v664
        %v701 = vld [vmem:[%s225] sm:$0xff]
        %v702 = vadd.f32 %v593, %v594
        %v703 = vadd.f32 %v702, %v595
        %v704 = vadd.f32 %v703, %v596
        %v705 = vadd.f32 %v704, %v597
        %v706 = vadd.f32 %v705, %v598
        %v707 = vadd.f32 %v706, %v599
        %v708 = vadd.f32 %v707, %v600
        %v709 = vadd.f32 %v708, %v601
        %v710 = vadd.f32 %v709, %v602
        %v711 = vadd.f32 %v710, %v603
        %v712 = vadd.f32 %v711, %v604
        %v713 = vadd.f32 %v712, %v605
        %v714 = vadd.f32 %v713, %v606
        %v715 = vadd.f32 %v714, %v607
        %v716 = vadd.f32 %v715, %v608
        %v717 = vadd.f32 %v716, %v609
        %v718 = vadd.f32 %v717, %v610
        %v719 = vadd.f32 %v718, %v611
        %v720 = vadd.f32 %v719, %v612
        %v721 = vadd.f32 %v720, %v613
        %v722 = vadd.f32 %v721, %v614
        %v723 = vadd.f32 %v722, %v615
        %v724 = vadd.f32 %v723, %v616
        %v725 = vadd.f32 %v724, %v617
        %v726 = vadd.f32 %v725, %v618
        %v727 = vadd.f32 %v726, %v619
        %v728 = vadd.f32 %v727, %v620
        %v729 = vadd.f32 %v728, %v621
        %v730 = vadd.f32 %v729, %v622
        %v731 = vadd.f32 %v730, %v623
        %v732 = vadd.f32 %v731, %v624
        %v733 = vadd.f32 %v732, %v625
        %v734 = vadd.f32 %v733, %v626
        %v735 = vadd.f32 %v734, %v627
        %v736 = vadd.f32 %v735, %v628
        %v737 = vadd.f32 %v701, %v736
        %738 = vst [vmem:[%s225] sm:$0xff] %v737
        %v739 = vld [vmem:[%s225 + $0x8] sm:$0xff]
        %v740 = vadd.f32 %v278, %v279
        %v741 = vadd.f32 %v740, %v280
        %v742 = vadd.f32 %v741, %v281
        %v743 = vadd.f32 %v742, %v282
        %v744 = vadd.f32 %v743, %v283
        %v745 = vadd.f32 %v744, %v284
        %v746 = vadd.f32 %v745, %v285
        %v747 = vadd.f32 %v746, %v286
        %v748 = vadd.f32 %v747, %v287
        %v749 = vadd.f32 %v748, %v288
        %v750 = vadd.f32 %v749, %v289
        %v751 = vadd.f32 %v750, %v290
        %v752 = vadd.f32 %v751, %v291
        %v753 = vadd.f32 %v752, %v292
        %v754 = vadd.f32 %v753, %v293
        %v755 = vadd.f32 %v754, %v294
        %v756 = vadd.f32 %v755, %v295
        %v757 = vadd.f32 %v756, %v296
        %v758 = vadd.f32 %v757, %v297
        %v759 = vadd.f32 %v758, %v298
        %v760 = vadd.f32 %v759, %v299
        %v761 = vadd.f32 %v760, %v300
        %v762 = vadd.f32 %v761, %v301
        %v763 = vadd.f32 %v762, %v302
        %v764 = vadd.f32 %v763, %v303
        %v765 = vadd.f32 %v764, %v304
        %v766 = vadd.f32 %v765, %v305
        %v767 = vadd.f32 %v766, %v306
        %v768 = vadd.f32 %v767, %v307
        %v769 = vadd.f32 %v768, %v308
        %v770 = vadd.f32 %v769, %v309
        %v771 = vadd.f32 %v770, %v310
        %v772 = vadd.f32 %v771, %v311
        %v773 = vadd.f32 %v772, %v312
        %v774 = vadd.f32 %v773, %v313
        %v775 = vadd.f32 %v739, %v774
        %776 = vst [vmem:[%s225 + $0x8] sm:$0xff] %v775
        %v777 = vld [vmem:[%s225 + $0x10] sm:$0xff]
        %v778 = vadd.f32 %v665, %v666
        %v779 = vadd.f32 %v778, %v667
        %v780 = vadd.f32 %v779, %v668
        %v781 = vadd.f32 %v780, %v669
        %v782 = vadd.f32 %v781, %v670
        %v783 = vadd.f32 %v782, %v671
        %v784 = vadd.f32 %v783, %v672
        %v785 = vadd.f32 %v784, %v673
        %v786 = vadd.f32 %v785, %v674
        %v787 = vadd.f32 %v786, %v675
        %v788 = vadd.f32 %v787, %v676
        %v789 = vadd.f32 %v788, %v677
        %v790 = vadd.f32 %v789, %v678
        %v791 = vadd.f32 %v790, %v679
        %v792 = vadd.f32 %v791, %v680
        %v793 = vadd.f32 %v792, %v681
        %v794 = vadd.f32 %v793, %v682
        %v795 = vadd.f32 %v794, %v683
        %v796 = vadd.f32 %v795, %v684
        %v797 = vadd.f32 %v796, %v685
        %v798 = vadd.f32 %v797, %v686
        %v799 = vadd.f32 %v798, %v687
        %v800 = vadd.f32 %v799, %v688
        %v801 = vadd.f32 %v800, %v689
        %v802 = vadd.f32 %v801, %v690
        %v803 = vadd.f32 %v802, %v691
        %v804 = vadd.f32 %v803, %v692
        %v805 = vadd.f32 %v804, %v693
        %v806 = vadd.f32 %v805, %v694
        %v807 = vadd.f32 %v806, %v695
        %v808 = vadd.f32 %v807, %v696
        %v809 = vadd.f32 %v808, %v697
        %v810 = vadd.f32 %v809, %v698
        %v811 = vadd.f32 %v810, %v699
        %v812 = vadd.f32 %v811, %v700
        %v813 = vadd.f32 %v777, %v812
        %814 = vst [vmem:[%s225 + $0x10] sm:$0xff] %v813
        %s815 = sand.u32 %s102, 1
        %s816 = scalar_lea.sflag [#allocation4], %s815
        %s817 = sand.u32 %s102, 1
        %s818 = smul.addr %s817, 24
        %s819 = scalar_lea.vmem [#allocation7], %s818
        // Predicated region
        $region41: #{tpu_custom_call.1} parent=27 // pred_check
          %p820 = pneg %p112
        $region42: #{tpu_custom_call.1} parent=27 // pred_check_branch
          %822 = sbr.rel (%p820) target = $region44
        $region43: #{tpu_custom_call.1} parent=27 // pred_region
          %s823 = smul.u32 3, %s26
          %s825 = ssub.s32 384, 384
          %826 = vsyncadd %s816, %s825
          %s827 = smul.addr %s823, 128
          %s828 = scalar_lea.hbm %s2, %s827
          %s829 = sshll.u32 %s819, 4
          %s830 = int_to_ptr.vmem [resolvable:$true] %s829
          %835 = dma.vmem_to_hbm [thread:$0]  %s830, 384, %s828, %s816, 128, 128, 8
        $region44: #{tpu_custom_call.1} parent=27 // pred_fallthru
          _
      $region28: #{tpu_custom_call.1} parent=5 // pred_fallthru
        _
      %p836 = scmp.le.s32.totalorder 2, %s17
      // Predicated region
      $region45: #{tpu_custom_call.1} parent=5 // pred_check
        %p837 = pneg %p836
      $region46: #{tpu_custom_call.1} parent=5 // pred_check_branch
        %839 = sbr.rel (%p837) target = $region48
      $region47: #{tpu_custom_call.1} parent=5 // pred_region
        %s840 = ssub.s32 %s17, 2
        // Predicated region
        $region49: #{tpu_custom_call.1} parent=47 // pred_check
          %p841 = pneg %p118
        $region50: #{tpu_custom_call.1} parent=47 // pred_check_branch
          %843 = sbr.rel (%p841) target = $region52
        $region51: #{tpu_custom_call.1} parent=47 // pred_region
          %s844 = sand.u32 %s103, 1
          %s845 = scalar_lea.sflag [#allocation4], %s844
          %s846 = sand.u32 %s103, 1
          %s847 = smul.addr %s846, 24
          %s848 = scalar_lea.vmem [#allocation7], %s847
          %849 = dma.done %s845, 384
        $region52: #{tpu_custom_call.1} parent=47 // pred_fallthru
          _
      $region48: #{tpu_custom_call.1} parent=5 // pred_fallthru
        _
    $region6: #{tpu_custom_call.1} parent=1 // loop_footer
      %s21 = sadd.s32 1, %s17
    $region7: #{tpu_custom_call.1} parent=1 // loop_footer_branch
      %16 = sbr.rel target = $region3
    $region8: #{tpu_custom_call.1} parent=1 // loop_exit
      _
    %850 = vsyncpa [#allocation3], 1
    %s851 = scalar_lea.sflag [#allocation3], 1
    %852 = vsyncpa %s851, 1
    %853 = vsyncpa [#allocation6], 1
    %s854 = scalar_lea.sflag [#allocation6], 1
    %855 = vsyncpa %s854, 1
    %856 = vsyncpa [#allocation4], 1
    %s857 = scalar_lea.sflag [#allocation4], 1
    %858 = vsyncpa %s857, 1

</llo_original>
